<compile_context>
chip_gen: v7x
topology: tpu7x:2x2x1
jax: 0.10.0
libtpu: 0.0.40
codegen_flags: <defaults>
</compile_context>

<pallas_src>
import functools

import numpy as np
import jax
import jax.numpy as jnp
from jax import lax
from jax.experimental import pallas as pl
from jax.experimental.pallas import tpu as pltpu


# 3x3 conv taps (dy, dx), row-major over (kh, kw).
OFF3 = tuple((dy, dx) for dy in (-1, 0, 1) for dx in (-1, 0, 1))
# 4x4 conv taps for the zero-dilated ConvTranspose (effective padding 2).
OFF4 = tuple((kh - 2, kw - 2) for kh in range(4) for kw in range(4))

_EPS = 1e-5


def _silu(v):
    return v * (1.0 / (1.0 + jnp.exp(-v)))


def _const_spec(arr):
    """BlockSpec for a weight that stays VMEM-resident across all grid steps."""
    return pl.BlockSpec(arr.shape, lambda i, _nd=arr.ndim: (0,) * _nd)


def _tap_masks(hh, ww, offsets):
    """(T, 1, S) 0/1 masks: mask[t, 0, s]==1 iff pixel (r+dy, c+dx) is in-bounds."""
    s = hh * ww
    r = np.arange(s) // ww
    c = np.arange(s) % ww
    m = np.zeros((len(offsets), 1, s), np.float32)
    for t, (dy, dx) in enumerate(offsets):
        valid = (r + dy >= 0) & (r + dy < hh) & (c + dx >= 0) & (c + dx < ww)
        m[t, 0, :] = valid
    return jnp.asarray(m)


def _group_matrix(c, group_size):
    """(C, C) 0/1 matrix: 1 where two channels belong to the same GroupNorm group."""
    g = np.arange(c) // group_size
    return jnp.asarray((g[:, None] == g[None, :]).astype(np.float32))


def _probe_roll_convention():
    """One-time hardware probe (tiny pallas_call, run outside jit): returns +1 if
    pltpu.roll follows the np.roll sign convention (out[i] = in[(i - shift) % n]),
    -1 otherwise.  Guards tap-shift directions against convention drift."""
    def kernel(x_ref, o_ref):
        o_ref[...] = pltpu.roll(x_ref[...], shift=1, axis=1)
    x = jnp.broadcast_to(jnp.arange(128, dtype=jnp.float32), (8, 128))
    out = pl.pallas_call(
        kernel, out_shape=jax.ShapeDtypeStruct((8, 128), jnp.float32))(x)
    return 1 if float(out[0, 0]) == 127.0 else -1


# ---------------------------------------------------------------------------
# Fused UpBlock kernel
# ---------------------------------------------------------------------------

def make_upblock_kernel(s, ww, c_in, c_out, num_heads, head_dim, roll_sign):
    """s: flattened full-res spatial size; ww: full-res width (2*W)."""
    inv_n_in = 1.0 / float((c_in // 8) * s)
    inv_n_out = 1.0 / float((c_out // 8) * s)
    q_scale = 1.0 / float(head_dim) ** 0.5

    def group_norm(v, gmat, gamma, beta, inv_n):
        # Two-pass (centered) statistics in f32; group reduction over channels via
        # a tiny (C, C) 0/1 matmul (avoids E[x^2]-mean^2 cancellation).
        mean = jnp.dot(gmat, jnp.sum(v, axis=1, keepdims=True),
                       preferred_element_type=jnp.float32) * inv_n
        cen = v - mean
        var = jnp.dot(gmat, jnp.sum(cen * cen, axis=1, keepdims=True),
                      preferred_element_type=jnp.float32) * inv_n
        return cen * (lax.rsqrt(var + _EPS) * gamma) + beta

    def tap_conv(x, w_ref, b_ref, offsets, mask_ref):
        # im2col over spatial taps: each tap = roll on the flat (lane) spatial axis
        # (XLU) * precomputed boundary mask (VPU), then ONE MXU matmul
        # (C_out, T*C_in) @ (T*C_in, S) in bf16 with f32 accumulation.
        pieces = []
        for t, (dy, dx) in enumerate(offsets):
            d = dy * ww + dx                      # flat offset of the sampled pixel
            if d == 0:
                pieces.append(x)
            else:
                shifted = pltpu.roll(x, shift=(-roll_sign * d) % s, axis=1)
                pieces.append(shifted * mask_ref[t])
        col = jnp.concatenate(pieces, axis=0).astype(jnp.bfloat16)
        return jnp.dot(w_ref[...], col,
                       preferred_element_type=jnp.float32) + b_ref[...]

    def kernel(xd_ref, od_ref, te_ref,
               gmin_ref, gmout_ref, m4_ref, m3_ref,
               wup_ref, bup_ref,
               gn1_g_ref, gn1_b_ref, w1_ref, b1_ref,
               gn2_g_ref, gn2_b_ref, w2_ref, b2_ref,
               wr_ref, br_ref,
               gna_g_ref, gna_b_ref,
               wq_ref, bq_ref, wk_ref, bk_ref, wv_ref, bv_ref, wo_ref, bo_ref,
               out_ref):
        xd = xd_ref[0]                       # (C_in/2, S) zero-dilated upsample input
        od = od_ref[0]                       # (C_in/2, S) skip connection
        gmat_in = gmin_ref[...]
        gmat_out = gmout_ref[...]

        # ConvTranspose2d(4, stride 2, pad 1) == 4x4 conv over the zero-dilated input.
        up = tap_conv(xd, wup_ref, bup_ref, OFF4, m4_ref)            # (C_in/2, S)

        xcat = jnp.concatenate([up, od], axis=0)                     # (C_in, S)

        # resnet_conv_first: GroupNorm(8) -> SiLU -> Conv3x3 (one im2col matmul).
        h = _silu(group_norm(xcat, gmat_in, gn1_g_ref[...], gn1_b_ref[...], inv_n_in))
        h = tap_conv(h, w1_ref, b1_ref, OFF3, m3_ref)                # (C_out, S)
        h = h + te_ref[0]                                            # t-emb (XLA-precomputed)

        # resnet_conv_second: GroupNorm(8) -> SiLU -> Conv3x3.
        h2 = _silu(group_norm(h, gmat_out, gn2_g_ref[...], gn2_b_ref[...], inv_n_out))
        h2 = tap_conv(h2, w2_ref, b2_ref, OFF3, m3_ref)

        # + 1x1 residual conv of the block input (resnet_input).
        out = h2 + jnp.dot(wr_ref[...], xcat.astype(jnp.bfloat16),
                           preferred_element_type=jnp.float32) + br_ref[...]

        # Attention: GroupNorm(8) -> MHA -> add.  Full-width QKV projections;
        # per-head slices only for the score / PV matmuls.
        a = group_norm(out, gmat_out, gna_g_ref[...], gna_b_ref[...], inv_n_out)
        ab = a.astype(jnp.bfloat16)
        q = (jnp.dot(wq_ref[...], ab, preferred_element_type=jnp.float32)
             + bq_ref[...]) * q_scale
        k = jnp.dot(wk_ref[...], ab, preferred_element_type=jnp.float32) + bk_ref[...]
        v = jnp.dot(wv_ref[...], ab, preferred_element_type=jnp.float32) + bv_ref[...]

        heads = []
        # TODO(synk): key-tile this loop (flash-style online softmax) so the (S, S)
        # score tile never fully materializes at large S on v7x's 64 MiB VMEM.
        for i in range(num_heads):
            lo = i * head_dim
            qh = q[lo:lo + head_dim, :].astype(jnp.bfloat16)          # (d, S)
            kh = k[lo:lo + head_dim, :].astype(jnp.bfloat16)
            vh = v[lo:lo + head_dim, :].astype(jnp.bfloat16)
            sc = lax.dot_general(qh, kh, (((0,), (0,)), ((), ())),
                                 preferred_element_type=jnp.float32)  # (S_q, S_k)
            sc = sc - jnp.max(sc, axis=1, keepdims=True)
            p = jnp.exp(sc)
            p = p * pl.reciprocal(jnp.sum(p, axis=1, keepdims=True), approx=True)
            o = lax.dot_general(vh, p.astype(jnp.bfloat16),
                                (((1,), (1,)), ((), ())),
                                preferred_element_type=jnp.float32)   # (d, S_q)
            heads.append(o)
        oc = jnp.concatenate(heads, axis=0).astype(jnp.bfloat16)      # (C_out, S)
        attn = jnp.dot(wo_ref[...], oc,
                       preferred_element_type=jnp.float32) + bo_ref[...]

        out_ref[0] = out + attn

    return kernel


# ---------------------------------------------------------------------------
# Parameter re-layout (hoisted: done once, outside the per-call path)
# ---------------------------------------------------------------------------

def prepare_kernel_params(p, *, num_heads):
    c_out, c_in = p["c1_w"].shape[:2]
    c_half = c_in // 2
    e = c_out

    def col(a):
        return jnp.asarray(a, jnp.float32).reshape(-1, 1)

    def bf16(a):
        return jnp.asarray(a, jnp.bfloat16)

    def conv3_mat(w):  # (O, I, 3, 3) -> (O, 9*I); column index = (kh*3+kw)*I + i
        return w.transpose(0, 2, 3, 1).reshape(w.shape[0], 9 * w.shape[1])

    # ConvTranspose weight (I, O, 4, 4) -> flipped 4x4 conv weight (O, 16*I) acting
    # on the zero-dilated input; column index = (kh*4+kw)*I + i.
    wf = jnp.flip(jnp.asarray(p["up_w"], jnp.float32), (2, 3)).transpose(1, 0, 2, 3)
    wup = wf.transpose(0, 2, 3, 1).reshape(c_half, 16 * c_half)

    ipw, ipb = p["attn_in_w"], p["attn_in_b"]

    return dict(
        wup=bf16(wup), up_b=col(p["up_b"]),
        gn1_g=col(p["gn1_g"]), gn1_b=col(p["gn1_b"]),
        w1=bf16(conv3_mat(jnp.asarray(p["c1_w"], jnp.float32))), b1=col(p["c1_b"]),
        gn2_g=col(p["gn2_g"]), gn2_b=col(p["gn2_b"]),
        w2=bf16(conv3_mat(jnp.asarray(p["c2_w"], jnp.float32))), b2=col(p["c2_b"]),
        wr=bf16(p["cr_w"][:, :, 0, 0]), br=col(p["cr_b"]),
        gna_g=col(p["gna_g"]), gna_b=col(p["gna_b"]),
        wq=bf16(ipw[:e]), bq=col(ipb[:e]),
        wk=bf16(ipw[e:2 * e]), bk=col(ipb[e:2 * e]),
        wv=bf16(ipw[2 * e:]), bv=col(ipb[2 * e:]),
        wo=bf16(p["attn_out_w"]), bo=col(p["attn_out_b"]),
        # t-emb branch is computed in XLA (tiny GEMV); keep its weights in f32.
        wt=jnp.asarray(p["t_w"], jnp.float32), bt=jnp.asarray(p["t_b"], jnp.float32),
    )


# ---------------------------------------------------------------------------
# Forward wrapper (single fused pallas_call)
# ---------------------------------------------------------------------------

def upblock_forward(x, out_down, t_emb, kp, *, num_heads, roll_sign=1):
    """Pallas forward of UpBlock (num_layers=1, up_sample=True). NCHW in/out."""
    b, c_half, h, w = x.shape
    _, _, h2, w2 = out_down.shape
    assert (h2, w2) == (2 * h, 2 * w)
    s = h2 * w2
    c_in = 2 * c_half
    c_out = kp["b1"].shape[0]
    head_dim = c_out // num_heads

    # Zero-dilate x to full resolution (stride-2 zero stuffing): the ConvTranspose
    # then becomes an ordinary 4x4 conv inside the kernel.  Pure input transform —
    # replaces the old phases kernel + HBM round trip + XLA sub-pixel transpose.
    xd = lax.pad(x.astype(jnp.float32), jnp.zeros((), jnp.float32),
                 [(0, 0, 0), (0, 0, 0), (0, 1, 1), (0, 1, 1)]).reshape(b, c_half, s)
    od = out_down.astype(jnp.float32).reshape(b, c_half, s)

    # t-emb branch (SiLU -> Linear) precomputed in XLA: tiny (B, t_dim) GEMV.
    te = jax.nn.silu(t_emb.astype(jnp.float32)) @ kp["wt"].T + kp["bt"]
    te = te.reshape(b, c_out, 1)

    mask4 = _tap_masks(h2, w2, OFF4)          # (16, 1, S) boundary masks, 4x4 taps
    mask3 = _tap_masks(h2, w2, OFF3)          # (9, 1, S)  boundary masks, 3x3 taps
    gmat_in = _group_matrix(c_in, c_in // 8)
    gmat_out = _group_matrix(c_out, c_out // 8)

    names = ["wup", "up_b", "gn1_g", "gn1_b", "w1", "b1",
             "gn2_g", "gn2_b", "w2", "b2", "wr", "br",
             "gna_g", "gna_b", "wq", "bq", "wk", "bk", "wv", "bv", "wo", "bo"]
    consts = [gmat_in, gmat_out, mask4, mask3] + [kp[n] for n in names]

    out_flat = pl.pallas_call(
        make_upblock_kernel(s, w2, c_in, c_out, num_heads, head_dim, roll_sign),
        out_shape=jax.ShapeDtypeStruct((b, c_out, s), jnp.float32),
        grid=(b,),
        in_specs=[
            pl.BlockSpec((1, c_half, s), lambda i: (i, 0, 0)),
            pl.BlockSpec((1, c_half, s), lambda i: (i, 0, 0)),
            pl.BlockSpec((1, c_out, 1), lambda i: (i, 0, 0)),
        ] + [_const_spec(a) for a in consts],
        out_specs=pl.BlockSpec((1, c_out, s), lambda i: (i, 0, 0)),
        # TODO(synk): for B == 1 on v7x add a second "parallel" grid axis (e.g. over
        # query-spatial tiles) so both TensorCores get work.
        compiler_params=pltpu.CompilerParams(
            dimension_semantics=("parallel",),
            vmem_limit_bytes=48 * 1024 * 1024),   # re-derive for large S on v7x (64 MiB)
    )(xd, od, te, *consts)

    return out_flat.reshape(b, c_out, h2, w2)


# ---------------------------------------------------------------------------
# Pure-JAX (XLA, f32) reference matching the PyTorch module
# ---------------------------------------------------------------------------

def reference_forward(x, out_down, t_emb, p, *, num_heads):
    def gn(v, g, bta, groups=8, eps=1e-5):
        n, c = v.shape[0], v.shape[1]
        vg = v.reshape(n, groups, -1)
        m = vg.mean(-1, keepdims=True)
        var = vg.var(-1, keepdims=True)
        vn = ((vg - m) / jnp.sqrt(var + eps)).reshape(v.shape)
        shp = (1, c) + (1,) * (v.ndim - 2)
        return vn * g.reshape(shp) + bta.reshape(shp)

    def silu(v):
        return v * jax.nn.sigmoid(v)

    def conv(v, wgt, bias, pad):
        o = lax.conv_general_dilated(v, wgt, (1, 1), ((pad, pad), (pad, pad)),
                                     dimension_numbers=("NCHW", "OIHW", "NCHW"))
        return o + bias[None, :, None, None]

    # ConvTranspose2d(c/2, c/2, 4, 2, 1) via dilated conv with flipped kernel.
    rhs = jnp.flip(p["up_w"], (2, 3)).transpose(1, 0, 2, 3)
    up = lax.conv_general_dilated(x, rhs, (1, 1), ((2, 2), (2, 2)),
                                  lhs_dilation=(2, 2),
                                  dimension_numbers=("NCHW", "OIHW", "NCHW"))
    up = up + p["up_b"][None, :, None, None]

    xcat = jnp.concatenate([up, out_down], axis=1)
    resnet_input = xcat
    out = conv(silu(gn(xcat, p["gn1_g"], p["gn1_b"])), p["c1_w"], p["c1_b"], 1)
    out = out + (silu(t_emb) @ p["t_w"].T + p["t_b"])[:, :, None, None]
    out = conv(silu(gn(out, p["gn2_g"], p["gn2_b"])), p["c2_w"], p["c2_b"], 1)
    out = out + conv(resnet_input, p["cr_w"], p["cr_b"], 0)

    b_, c_, hh, wwf = out.shape
    l_ = hh * wwf
    in_attn = gn(out.reshape(b_, c_, l_), p["gna_g"], p["gna_b"]).transpose(0, 2, 1)
    e = c_
    hd = e // num_heads
    qkv = in_attn @ p["attn_in_w"].T + p["attn_in_b"]
    q, k, v = jnp.split(qkv, 3, axis=-1)

    def heads(t):
        return t.reshape(b_, l_, num_heads, hd).transpose(0, 2, 1, 3)

    q, k, v = heads(q), heads(k), heads(v)
    scores = (q * (1.0 / float(hd) ** 0.5)) @ k.transpose(0, 1, 3, 2)
    pr = jax.nn.softmax(scores, axis=-1)
    o = (pr @ v).transpose(0, 2, 1, 3).reshape(b_, l_, e)
    o = o @ p["attn_out_w"].T + p["attn_out_b"]
    out_attn = o.transpose(0, 2, 1).reshape(b_, c_, hh, wwf)
    return out + out_attn


# ---------------------------------------------------------------------------
# Demo / self-check
# ---------------------------------------------------------------------------

if __name__ == "__main__":
    B = 2
    in_channels = 16       # channels after concat; multiple of 8
    out_channels = 32      # multiple of 8; head_dim = 32/4 = 8 keeps per-head
                           # slices / head-concat sublane-aligned
    t_emb_dim = 32
    num_heads = 4
    H = W = 8              # spatial size of x before upsampling -> 16x16 output

    key = jax.random.PRNGKey(0)
    keys = jax.random.split(key, 32)
    it = iter(keys)

    def nrm(shape, scale=0.2):
        return scale * jax.random.normal(next(it), shape, jnp.float32)

    c_half = in_channels // 2
    x = jax.random.normal(next(it), (B, c_half, H, W), jnp.float32)
    out_down = jax.random.normal(next(it), (B, c_half, 2 * H, 2 * W), jnp.float32)
    t_emb = jax.random.normal(next(it), (B, t_emb_dim), jnp.float32)

    params = dict(
        up_w=nrm((c_half, c_half, 4, 4)), up_b=nrm((c_half,), 0.1),
        gn1_g=1.0 + nrm((in_channels,), 0.1), gn1_b=nrm((in_channels,), 0.1),
        c1_w=nrm((out_channels, in_channels, 3, 3)), c1_b=nrm((out_channels,), 0.1),
        t_w=nrm((out_channels, t_emb_dim)), t_b=nrm((out_channels,), 0.1),
        gn2_g=1.0 + nrm((out_channels,), 0.1), gn2_b=nrm((out_channels,), 0.1),
        c2_w=nrm((out_channels, out_channels, 3, 3)), c2_b=nrm((out_channels,), 0.1),
        gna_g=1.0 + nrm((out_channels,), 0.1), gna_b=nrm((out_channels,), 0.1),
        attn_in_w=nrm((3 * out_channels, out_channels)),
        attn_in_b=nrm((3 * out_channels,), 0.1),
        attn_out_w=nrm((out_channels, out_channels)),
        attn_out_b=nrm((out_channels,), 0.1),
        cr_w=nrm((out_channels, in_channels, 1, 1)), cr_b=nrm((out_channels,), 0.1),
    )

    # Hoisted once: parameter re-layout + roll-sign probe (tiny one-off kernel).
    kp = prepare_kernel_params(params, num_heads=num_heads)
    roll_sign = _probe_roll_convention()
    fwd = jax.jit(functools.partial(upblock_forward, num_heads=num_heads,
                                    roll_sign=roll_sign))

    out = fwd(x, out_down, t_emb, kp)
    jax.block_until_ready(out)

    ref = reference_forward(x, out_down, t_emb, params, num_heads=num_heads)
    assert out.shape == (B, out_channels, 2 * H, 2 * W), out.shape
    max_err = float(jnp.max(jnp.abs(out - ref)))
    # bf16 MXU operands (f32 accumulation) vs the all-f32 XLA reference.
    assert jnp.allclose(out, ref, atol=8e-2, rtol=8e-2), \
        f"mismatch, max|diff|={max_err}"

    print("KERNEL_OK")
</pallas_src>

<mosaic_0001>
module attributes {stable_mosaic.version = 11 : i64} {
  func.func @kernel(%arg0: memref<8x128xf32, #tpu.memory_space<vmem>>, %arg1: memref<8x128xf32, #tpu.memory_space<vmem>>) attributes {dimension_semantics = [], scalar_prefetch = 0 : i64, scratch_operands = 0 : i64, tpu.core_type = #tpu.core_type<tc>} {
    %c0 = arith.constant 0 : index
    %c0_0 = arith.constant 0 : index
    %0 = vector.load %arg0[%c0, %c0_0] : memref<8x128xf32, #tpu.memory_space<vmem>>, vector<8x128xf32>
    %c1_i32 = arith.constant 1 : i32
    %1 = tpu.dynamic_rotate %0 by %c1_i32 dim 1 : vector<8x128xf32>, i32 -> vector<8x128xf32>
    %c0_1 = arith.constant 0 : index
    %c0_2 = arith.constant 0 : index
    %2 = vector.load %arg1[%c0_1, %c0_2] : memref<8x128xf32, #tpu.memory_space<vmem>>, vector<8x128xf32>
    tpu.vector_store %arg1[%c0_1, %c0_2], %1 {strides = array<i32>} : memref<8x128xf32, #tpu.memory_space<vmem>>, vector<8x128xf32>,
    return
  }
}

</mosaic_0001>

<llo_original>
// kernel: tpu_custom_call.1
$region0: #{tpu_custom_call.1}
  #allocation0 [shape = 'u32[]', space=smem, size = 0x4, offset = 0x4, fixed_abs, tag = 'smem constant byte address 0x4 - core index']
  #allocation1 [shape = 'u32[144,128]{1,0:T(1,128)}', space=vmem, size = 0x12000, scoped, tag = 'internal scratch']
  %s0 = inlined_call_operand.hbm [shape: f32[8,128], index: 0, kind: input, shape index: {}]
  %s1 = inlined_call_operand.hbm [shape: f32[8,128], index: 1, kind: output, shape index: {}]
  %s2 = sld [smem:[#allocation0]]
  $region18: #{tpu_custom_call.1} parent=0
    _
  %s4 = ssub.s32 1, %s2
  %s5 = scalar_select 0, %s4, %s2
  $region1: #{tpu_custom_call.1} parent=0
    #allocation2 [shape = 'u8[4096]{0}', space=vmem, size = 0x1000, scoped, tag = 'input window, operand 0, single buffered']
    #allocation3 [shape = 's32[1]{0}', space=sflag, size = 0x4, scoped, tag = 'scoped memory for tpu_custom_call.1']
    #allocation4 [shape = 's32[1]{0}', space=sflag, size = 0x4, scoped, tag = 'scoped memory for tpu_custom_call.1']
    #allocation5 [shape = 'u8[4096]{0}', space=vmem, size = 0x1000, scoped, tag = 'output window, operand 0, single buffered']
    %6 = vsyncpa [#allocation3], 0
    %7 = vsyncpa [#allocation4], 0
    // Predicated region
    $region2: #{tpu_custom_call.1} parent=1 // pred_check
      _
    $region3: #{tpu_custom_call.1} parent=1 // pred_check_branch
      %9 = sbr.rel (0) target = $region5
    $region4: #{tpu_custom_call.1} parent=1 // pred_region
      %s11 = ssub.s32 128, 128
      %12 = vsyncadd [#allocation3], %s11
      %s14 = sshll.u32 [#allocation2], 4
      %s15 = int_to_ptr.vmem [resolvable:$true] %s14
      %17 = dma.hbm_to_vmem [thread:$0]  %s0, 128, %s15, [#allocation3]
    $region5: #{tpu_custom_call.1} parent=1 // pred_fallthru
      _
    // Predicated region
    $region6: #{tpu_custom_call.1} parent=1 // pred_check
      _
    $region7: #{tpu_custom_call.1} parent=1 // pred_check_branch
      %19 = sbr.rel (0) target = $region9
    $region8: #{tpu_custom_call.1} parent=1 // pred_region
      %20 = dma.done [#allocation3], 128
    $region9: #{tpu_custom_call.1} parent=1 // pred_fallthru
      _
    %v21 = vld [vmem:[#allocation2] sm:$0xff]
    %22 = vrot.lane.b32.xlu0 %v21, 1
    %v23 = vpop.permute.xlu0 %22
    %24 = vst [vmem:[#allocation5] sm:$0xff] %v23
    // Predicated region
    $region10: #{tpu_custom_call.1} parent=1 // pred_check
      _
    $region11: #{tpu_custom_call.1} parent=1 // pred_check_branch
      %26 = sbr.rel (0) target = $region13
    $region12: #{tpu_custom_call.1} parent=1 // pred_region
      %s28 = ssub.s32 128, 128
      %29 = vsyncadd [#allocation4], %s28
      %s31 = sshll.u32 [#allocation5], 4
      %s32 = int_to_ptr.vmem [resolvable:$true] %s31
      %34 = dma.vmem_to_hbm [thread:$0]  %s32, 128, %s1, [#allocation4]
    $region13: #{tpu_custom_call.1} parent=1 // pred_fallthru
      _
    // Predicated region
    $region14: #{tpu_custom_call.1} parent=1 // pred_check
      _
    $region15: #{tpu_custom_call.1} parent=1 // pred_check_branch
      %36 = sbr.rel (0) target = $region17
    $region16: #{tpu_custom_call.1} parent=1 // pred_region
      %37 = dma.done [#allocation4], 128
    $region17: #{tpu_custom_call.1} parent=1 // pred_fallthru
      _
    %38 = vsyncpa [#allocation3], 1
    %39 = vsyncpa [#allocation4], 1

</llo_original>
